<compile_context>
chip_gen: v5e
topology: v5e:2x2
jax: 0.10.0
libtpu: 0.0.40
codegen_flags: <defaults>
</compile_context>

<pallas_src>
import jax
import jax.numpy as jnp
from jax.experimental import pallas as pl
from jax.experimental.pallas import tpu as pltpu
import numpy as np

MEAN = np.array([0.485, 0.456, 0.406], dtype=np.float32)
STD = np.array([0.229, 0.224, 0.225], dtype=np.float32)


def _normalize_kernel(x_ref, scale_ref, bias_ref, o_ref):
    # x_ref: (TR, TS) tile.  scale/bias are (TR, 1) or (1, TS) f32 affine
    # params; jnp broadcasting handles both layouts.  Two VPU ops + casts:
    # pure filler under the HBM-bandwidth bottleneck.
    x = x_ref[...].astype(jnp.float32)
    o = x * scale_ref[...] + bias_ref[...]
    o_ref[...] = o.astype(o_ref.dtype)


def _target_block_bytes():
    """Per-generation (input + output) bytes per grid step."""
    try:
        kind = jax.devices()[0].device_kind.lower()
    except Exception:
        kind = ""
    if "v5 lite" in kind or "v5e" in kind or "v5lite" in kind:
        return 2 << 20   # v5e: ~820 GB/s HBM, 16 MiB scoped-VMEM default
    if "v6" in kind:
        return 4 << 20   # v6e: ~1.4 TB/s HBM, 128 MiB VMEM
    if "v7" in kind or "7x" in kind:
        return 6 << 20   # v7x: 3.2 TB/s/TC -> amortize ~0.35us/step overhead
    return 4 << 20       # sensible default


def _best_lane_tile(S, max_ts):
    """Largest lane tile: full extent if small, else a 128-multiple divisor."""
    if S <= max_ts:
        return S
    if S % 128 != 0:
        # Misaligned large lane extent (fallback layout only): full extent is
        # always a legal block shape.
        return S
    start = (max_ts // 128) * 128
    for ts in range(start, 127, -128):
        if S % ts == 0:
            if ts >= max_ts // 4:
                return ts          # even divisor -> every store unmasked
            break
    return start                   # ragged last tile, but big tiles otherwise


def _choose_tiles(R, S, in_itemsize, out_itemsize, target_bytes, max_ts=4096):
    """Pick (TR, TS): lane-dense, (8,128)-legal, ~target_bytes of in+out."""
    TS = _best_lane_tile(S, max_ts)
    per_row = TS * (in_itemsize + out_itemsize)
    rows = max(1, target_bytes // max(1, per_row))
    if rows >= R or R <= 8:
        TR = R
    else:
        TR = min(R, max(8, (rows // 8) * 8))
    # v7x has 2 TensorCores; keep the 'parallel' grid at >=4 steps when we can
    # do so without breaking the multiple-of-8 sublane-tile rule.
    n_col = pl.cdiv(S, TS)
    while n_col * pl.cdiv(R, TR) < 4 and TR % 16 == 0 and TR > 8:
        TR //= 2
    return TR, TS


def normalize(x, mean, std):
    """x: (N, C, H, W). Returns (x - mean[c]) / std[c] per channel."""
    N, C, H, W = x.shape
    mean = jnp.asarray(mean, dtype=jnp.float32)
    std = jnp.asarray(std, dtype=jnp.float32)

    # Affine form (3 scalars each -- free in the wrapper).
    scale = 1.0 / std            # (C,)
    bias = -mean / std           # (C,)

    out_dtype = x.dtype if jnp.issubdtype(x.dtype, jnp.floating) else jnp.float32
    in_item = int(jnp.dtype(x.dtype).itemsize)
    out_item = int(jnp.dtype(out_dtype).itemsize)
    HW = H * W
    target = _target_block_bytes()

    lane_dense = (HW >= 128) and (HW % 128 == 0)

    if lane_dense:
        # (N*C, H*W): row r -> channel r % C; per-row (TR,1) scale/bias.
        R, S = N * C, HW
        x2 = x.reshape(R, S)                       # free reshape (contiguous)
        scale_arr = jnp.tile(scale, N).reshape(R, 1)
        bias_arr = jnp.tile(bias, N).reshape(R, 1)
        TR, TS = _choose_tiles(R, S, in_item, out_item, target)
        in_specs = [
            pl.BlockSpec((TR, TS), lambda i, j: (i, j)),   # x tile
            pl.BlockSpec((TR, 1), lambda i, j: (i, 0)),    # per-row scale
            pl.BlockSpec((TR, 1), lambda i, j: (i, 0)),    # per-row bias
        ]
    else:
        # Small / misaligned H*W: (N, C*H*W) keeps the lane dim as large as
        # possible; scale/bias become (1, C*H*W) rows (sublane broadcast).
        R, S = N, C * HW
        x2 = x.reshape(R, S)
        scale_arr = jnp.repeat(scale, HW).reshape(1, S)
        bias_arr = jnp.repeat(bias, HW).reshape(1, S)
        TR, TS = _choose_tiles(R, S, in_item, out_item, target)
        in_specs = [
            pl.BlockSpec((TR, TS), lambda i, j: (i, j)),   # x tile
            pl.BlockSpec((1, TS), lambda i, j: (0, j)),    # per-element scale
            pl.BlockSpec((1, TS), lambda i, j: (0, j)),    # per-element bias
        ]

    grid = (pl.cdiv(R, TR), pl.cdiv(S, TS))

    # VMEM budget: double-buffered input + output tiles plus the affine rows.
    block_bytes = TR * TS * (in_item + out_item)
    affine_bytes = 2 * max(TR, TS) * 4
    needed = 2 * block_bytes + 2 * affine_bytes
    # Explicit limit: >= computed need (+headroom), never below 16 MiB, and
    # well under v7x's 64 MiB physical VMEM.
    vmem_limit = int(min(max(needed + (4 << 20), 16 << 20), 48 << 20))

    cost = pl.CostEstimate(
        flops=2 * R * S,
        transcendentals=0,
        bytes_accessed=R * S * (in_item + out_item) + 2 * int(scale_arr.size) * 4,
    )

    out = pl.pallas_call(
        _normalize_kernel,
        out_shape=jax.ShapeDtypeStruct((R, S), out_dtype),
        grid=grid,
        in_specs=in_specs,
        out_specs=pl.BlockSpec((TR, TS), lambda i, j: (i, j)),
        compiler_params=pltpu.CompilerParams(
            dimension_semantics=("parallel", "parallel"),
            vmem_limit_bytes=vmem_limit),
        cost_estimate=cost,
    )(x2, scale_arr, bias_arr)

    return out.reshape(N, C, H, W)


if __name__ == "__main__":
    key = jax.random.PRNGKey(0)
    mean_j = jnp.asarray(MEAN, jnp.float32)[None, :, None, None]
    std_j = jnp.asarray(STD, jnp.float32)[None, :, None, None]

    # Main (lane-dense) path: H*W = 256 is a multiple of 128.
    x = jax.random.uniform(key, (2, 3, 16, 16), dtype=jnp.float32)
    out = jax.block_until_ready(normalize(x, MEAN, STD))
    ref = (x - mean_j) / std_j
    assert out.shape == x.shape and out.dtype == x.dtype
    np.testing.assert_allclose(np.asarray(out), np.asarray(ref),
                               rtol=1e-5, atol=1e-6)

    # Fallback path: H*W = 25 (< 128, misaligned) -> (N, C*H*W) layout.
    x_small = jax.random.uniform(jax.random.PRNGKey(1), (2, 3, 5, 5),
                                 dtype=jnp.float32)
    out_small = jax.block_until_ready(normalize(x_small, MEAN, STD))
    ref_small = (x_small - mean_j) / std_j
    np.testing.assert_allclose(np.asarray(out_small), np.asarray(ref_small),
                               rtol=1e-5, atol=1e-6)

    print("KERNEL_OK")
</pallas_src>

<mosaic_0001>
module attributes {stable_mosaic.version = 11 : i64} {
  func.func @_normalize_kernel(%arg0: i32, %arg1: i32, %arg2: memref<6x256xf32, #tpu.memory_space<vmem>>, %arg3: memref<6x1xf32, #tpu.memory_space<vmem>>, %arg4: memref<6x1xf32, #tpu.memory_space<vmem>>, %arg5: memref<6x256xf32, #tpu.memory_space<vmem>>) attributes {dimension_semantics = [#tpu.dimension_semantics<parallel>, #tpu.dimension_semantics<parallel>], iteration_bounds = array<i64: 1, 1>, scalar_prefetch = 0 : i64, scratch_operands = 0 : i64, tpu.core_type = #tpu.core_type<tc>, window_params = [{transform_indices = @transform_0, window_bounds = array<i64: 6, 256>}, {transform_indices = @transform_1, window_bounds = array<i64: 6, 1>}, {transform_indices = @transform_2, window_bounds = array<i64: 6, 1>}, {transform_indices = @transform_3, window_bounds = array<i64: 6, 256>}]} {
    %c0 = arith.constant 0 : index
    %c0_0 = arith.constant 0 : index
    %0 = vector.load %arg2[%c0, %c0_0] : memref<6x256xf32, #tpu.memory_space<vmem>>, vector<6x256xf32>
    %c0_1 = arith.constant 0 : index
    %c0_2 = arith.constant 0 : index
    %1 = vector.load %arg3[%c0_1, %c0_2] : memref<6x1xf32, #tpu.memory_space<vmem>>, vector<6x1xf32>
    %2 = vector.broadcast %1 : vector<6x1xf32> to vector<6x256xf32>
    %3 = arith.mulf %0, %2 : vector<6x256xf32>
    %c0_3 = arith.constant 0 : index
    %c0_4 = arith.constant 0 : index
    %4 = vector.load %arg4[%c0_3, %c0_4] : memref<6x1xf32, #tpu.memory_space<vmem>>, vector<6x1xf32>
    %5 = vector.broadcast %4 : vector<6x1xf32> to vector<6x256xf32>
    %6 = arith.addf %3, %5 : vector<6x256xf32>
    %c0_5 = arith.constant 0 : index
    %c0_6 = arith.constant 0 : index
    %7 = vector.load %arg5[%c0_5, %c0_6] : memref<6x256xf32, #tpu.memory_space<vmem>>, vector<6x256xf32>
    tpu.vector_store %arg5[%c0_5, %c0_6], %6 {strides = array<i32>} : memref<6x256xf32, #tpu.memory_space<vmem>>, vector<6x256xf32>,
    return
  }
  func.func @transform_0(%arg0: i32, %arg1: i32) -> (i32, i32) {
    %c0_i32 = arith.constant 0 : i32
    return %arg0, %arg1 : i32, i32
  }
  func.func @transform_1(%arg0: i32, %arg1: i32) -> (i32, i32) {
    %c0_i32 = arith.constant 0 : i32
    %c0_i32_0 = arith.constant 0 : i32
    return %arg0, %c0_i32 : i32, i32
  }
  func.func @transform_2(%arg0: i32, %arg1: i32) -> (i32, i32) {
    %c0_i32 = arith.constant 0 : i32
    %c0_i32_0 = arith.constant 0 : i32
    return %arg0, %c0_i32 : i32, i32
  }
  func.func @transform_3(%arg0: i32, %arg1: i32) -> (i32, i32) {
    %c0_i32 = arith.constant 0 : i32
    return %arg0, %arg1 : i32, i32
  }
}

</mosaic_0001>

<llo_original>
// kernel: tpu_custom_call.1
$region0: #{tpu_custom_call.1}
  #allocation0 [shape = 'u32[]', space=smem, size = 0x4, offset = 0x4, fixed_abs, tag = 'smem constant byte address 0x4 - core index']
  #allocation1 [shape = 'u32[72,128]{1,0:T(1,128)}', space=vmem, size = 0x9000, scoped, tag = 'internal scratch']
  %s0 = inlined_call_operand.vmem [shape: f32[6,256], index: 0, kind: input, shape index: {}]
  %s1 = inlined_call_operand.vmem [shape: f32[6,1], index: 1, kind: input, shape index: {}]
  %s2 = inlined_call_operand.vmem [shape: f32[6,1], index: 2, kind: input, shape index: {}]
  %s3 = inlined_call_operand.hbm [shape: f32[6,256], index: 3, kind: output, shape index: {}]
  %s4 = sld [smem:[#allocation0]]
  $region22: #{tpu_custom_call.1} parent=0
    _
  %s6 = ssub.s32 1, %s4
  %s7 = scalar_select 0, %s6, %s4
  $region1: #{tpu_custom_call.1} parent=0
    #allocation2 [shape = 'u8[8192]{0}', space=vmem, size = 0x2000, scoped, tag = 'output window, operand 0, single buffered']
    #allocation3 [shape = 's32[1]{0}', space=sflag, size = 0x4, scoped, tag = 'scoped memory for tpu_custom_call.1']
    %8 = vsyncpa [#allocation3], 0
    // Predicated region
    $region2: #{tpu_custom_call.1} parent=1 // pred_check
      _
    $region3: #{tpu_custom_call.1} parent=1 // pred_check_branch
      %10 = sbr.rel (0) target = $region5
    $region4: #{tpu_custom_call.1} parent=1 // pred_region
      _
    $region5: #{tpu_custom_call.1} parent=1 // pred_fallthru
      _
    // Predicated region
    $region6: #{tpu_custom_call.1} parent=1 // pred_check
      _
    $region7: #{tpu_custom_call.1} parent=1 // pred_check_branch
      %12 = sbr.rel (0) target = $region9
    $region8: #{tpu_custom_call.1} parent=1 // pred_region
      _
    $region9: #{tpu_custom_call.1} parent=1 // pred_fallthru
      _
    // Predicated region
    $region10: #{tpu_custom_call.1} parent=1 // pred_check
      _
    $region11: #{tpu_custom_call.1} parent=1 // pred_check_branch
      %14 = sbr.rel (0) target = $region13
    $region12: #{tpu_custom_call.1} parent=1 // pred_region
      _
    $region13: #{tpu_custom_call.1} parent=1 // pred_fallthru
      _
    %v15 = vld [vmem:[%s0] sm:$0x3f]
    %v16 = vld [vmem:[%s0 + $0x8] sm:$0x3f]
    %v17 = vld [vmem:[%s1] sm:$0x3f]
    %19 = vset.pattern.permute.xlu0 0
    %20 = vperm.xlu0 %19, %v17
    %v21 = vpop.permute.xlu0 %20
    %v23 = vmul.f32 %v15, %v21
    %v24 = vmul.f32 %v16, %v21
    %v25 = vld [vmem:[%s2] sm:$0x3f]
    %27 = vset.pattern.permute.xlu0 0
    %28 = vperm.xlu0 %27, %v25
    %v29 = vpop.permute.xlu0 %28
    %v31 = vadd.f32 %v23, %v29
    %v32 = vadd.f32 %v24, %v29
    %33 = vst [vmem:[#allocation2] sm:$0x3f] %v31
    %34 = vst [vmem:[#allocation2 + $0x8] sm:$0x3f] %v32
    // Predicated region
    $region14: #{tpu_custom_call.1} parent=1 // pred_check
      _
    $region15: #{tpu_custom_call.1} parent=1 // pred_check_branch
      %36 = sbr.rel (0) target = $region17
    $region16: #{tpu_custom_call.1} parent=1 // pred_region
      %38 = vsyncadd [#allocation3], 0
      %s40 = sshll.u32 [#allocation2], 4
      %s41 = int_to_ptr.vmem [resolvable:$true] %s40
      %s42 = sshll.u32 %s3, 4
      %s43 = int_to_ptr.hbm [resolvable:$true] %s42
      %45 = dma.vmem_to_hbm [thread:$0]  %s41, 256, %s43, [#allocation3]
    $region17: #{tpu_custom_call.1} parent=1 // pred_fallthru
      _
    // Predicated region
    $region18: #{tpu_custom_call.1} parent=1 // pred_check
      _
    $region19: #{tpu_custom_call.1} parent=1 // pred_check_branch
      %47 = sbr.rel (0) target = $region21
    $region20: #{tpu_custom_call.1} parent=1 // pred_region
      %49 = dma.done [#allocation3], 256
    $region21: #{tpu_custom_call.1} parent=1 // pred_fallthru
      _
    %50 = vsyncpa [#allocation3], 1

</llo_original>
